<compile_context>
chip_gen: v7x
topology: tpu7x:2x2x1
jax: 0.10.0
libtpu: 0.0.40
codegen_flags: <defaults>
</compile_context>

<pallas_src>
import functools

import jax
import jax.numpy as jnp
from jax import lax
from jax.experimental import pallas as pl
from jax.experimental.pallas import tpu as pltpu


# ---------------------------------------------------------------------------
# Interpolation matrices (glue, plain JAX) — matches PyTorch conventions.
# ---------------------------------------------------------------------------
def bilinear_matrix(n_in: int, scale: int) -> jnp.ndarray:
    """(n_out, n_in) matrix M with y = M @ x == 1-D bilinear upsampling,
    align_corners=False (half-pixel centers), as in F.interpolate."""
    n_out = n_in * scale
    out_idx = jnp.arange(n_out, dtype=jnp.float32)
    src = (out_idx + 0.5) / float(scale) - 0.5
    src = jnp.clip(src, 0.0, float(n_in - 1))
    i0 = jnp.floor(src).astype(jnp.int32)
    i1 = jnp.minimum(i0 + 1, n_in - 1)
    w1 = src - i0.astype(jnp.float32)
    w0 = 1.0 - w1
    rows = jnp.arange(n_out)
    m = jnp.zeros((n_out, n_in), dtype=jnp.float32)
    m = m.at[rows, i0].add(w0)
    m = m.at[rows, i1].add(w1)
    return m


def nearest_matrix(n_in: int, scale: int) -> jnp.ndarray:
    """(n_out, n_in) matrix for PyTorch mode='nearest': src = floor(dst / scale)."""
    n_out = n_in * scale
    rows = jnp.arange(n_out)
    cols = rows // scale
    m = jnp.zeros((n_out, n_in), dtype=jnp.float32)
    m = m.at[rows, cols].set(1.0)
    return m


# ---------------------------------------------------------------------------
# Hardware / tiling helpers.
# ---------------------------------------------------------------------------
def _vmem_capacity_bytes() -> int:
    try:
        return int(pltpu.get_tpu_info().vmem_capacity_bytes)
    except Exception:
        return 64 * 1024 * 1024  # conservative (v7x per-TC size)


def _choose_tb(nc: int, per_slice_bytes: int, budget_bytes: int,
               min_grid: int = 4, max_tb: int = 256) -> int:
    """Slices per grid step: as large as the VMEM budget allows, while keeping
    >= min_grid grid steps (pipeline overlap; 2 steps per core on v7x's 2 TCs).
    Prefers an exact divisor of nc (no padding); otherwise the caller pads."""
    cap = max(1, min(nc, max_tb, budget_bytes // max(per_slice_bytes, 1)))
    cap = min(cap, max(1, -(-nc // min_grid)))           # keep grid >= min_grid
    for tb in range(cap, max(cap // 2, 1) - 1, -1):      # prefer no padding
        if nc % tb == 0:
            return tb
    return cap


# ---------------------------------------------------------------------------
# Pallas kernel
# ---------------------------------------------------------------------------
def mixupsample_kernel(x_ref, bhnh_ref, bwnw_ref, o_ref, st_ref):
    # x_ref    : VMEM (TB, H, W)     block of batch*channel spatial slices
    # bhnh_ref : VMEM (Ho, 2H)       [bilinear_H | nearest_H] row-interp matrix
    # bwnw_ref : VMEM (W, 2Wo)       [m*bilinear_W^T | (1-m)*nearest_W^T]
    # o_ref    : VMEM (TB, Ho, Wo)
    # st_ref   : VMEM (TB, 2H, Wo)   scratch: stacked W-stage results
    tb, h, w = x_ref.shape
    wo = o_ref.shape[2]

    # --- W-stage: ONE fused matmul over all TB*H rows (mix folded into RHS).
    x2d = x_ref[...].astype(jnp.float32).reshape(tb * h, w)
    p = jnp.dot(x2d, bwnw_ref[...], preferred_element_type=jnp.float32)  # (TB*H, 2Wo)
    p = p.reshape(tb, h, 2 * wo)
    # Stack bilinear / nearest halves along the (row) contraction axis for the
    # fused H-stage.  For Wo % 128 == 0 these lane slices are tile-aligned.
    st_ref[:, :h, :] = p[:, :, :wo]
    st_ref[:, h:, :] = p[:, :, wo:]

    bhnh = bhnh_ref[...]

    # --- H-stage: ONE matmul per slice (K = 2H), already mixed; single store.
    def h_stage(b):
        o_ref[b] = jnp.dot(bhnh, st_ref[b],
                           preferred_element_type=jnp.float32).astype(o_ref.dtype)

    if tb <= 8:
        for b in range(tb):          # short static unroll: LLO-visible
            h_stage(b)
    else:
        def body(b, carry):          # bounded live range for large TB
            h_stage(b)
            return carry
        lax.fori_loop(0, tb, body, 0)


# ---------------------------------------------------------------------------
# Wrapper
# ---------------------------------------------------------------------------
@functools.partial(jax.jit, static_argnames=("scale_factor",))
def mixupsample(x: jnp.ndarray, mixing: jnp.ndarray, scale_factor: int = 2):
    """x: (N, C, H, W), mixing: scalar. Returns (N, C, H*s, W*s)."""
    assert isinstance(scale_factor, int) and scale_factor >= 2, \
        "integer upsampling scale >= 2 required (DAFormer uses 2 or 4)"
    N, C, H, W = x.shape
    s = scale_factor
    Ho, Wo = H * s, W * s
    NC = N * C

    m = jnp.asarray(mixing, dtype=jnp.float32)
    bh = bilinear_matrix(H, s)                 # (Ho, H)
    nh = nearest_matrix(H, s)                  # (Ho, H)
    bw = bilinear_matrix(W, s)                 # (Wo, W)
    nw = nearest_matrix(W, s)                  # (Wo, W)
    bhnh = jnp.concatenate([bh, nh], axis=1)                              # (Ho, 2H)
    bwnw = jnp.concatenate([(m * bw).T, ((1.0 - m) * nw).T], axis=1)      # (W, 2Wo)

    # Generation-aware VMEM budgets.
    vmem_cap = _vmem_capacity_bytes()
    budget = min(vmem_cap // 2, 64 * 1024 * 1024)          # per-step block budget
    vmem_limit = min((vmem_cap * 3) // 4, 96 * 1024 * 1024)

    # Per-slice VMEM estimate (f32): double-buffered in/out blocks + W-stage
    # intermediate + stacked scratch.
    per_slice = 4 * (3 * H * W + 2 * Ho * Wo + 4 * H * Wo)
    TB = _choose_tb(NC, per_slice, budget)
    grid = pl.cdiv(NC, TB)
    NC_pad = grid * TB

    x_flat = x.reshape(NC, H, W)
    if NC_pad != NC:                           # pad awkward NC instead of TB=1
        x_flat = jnp.pad(x_flat, ((0, NC_pad - NC), (0, 0), (0, 0)))

    flops = int(NC_pad * (2 * H * W * (2 * Wo) + 2 * Ho * (2 * H) * Wo))
    bytes_accessed = int(x.dtype.itemsize * NC_pad * (H * W + Ho * Wo)
                         + 4 * (Ho * 2 * H + W * 2 * Wo))

    out_flat = pl.pallas_call(
        mixupsample_kernel,
        out_shape=jax.ShapeDtypeStruct((NC_pad, Ho, Wo), x.dtype),
        grid_spec=pltpu.PrefetchScalarGridSpec(
            num_scalar_prefetch=0,
            grid=(grid,),
            in_specs=[
                pl.BlockSpec((TB, H, W), lambda i: (i, 0, 0)),   # x block
                pl.BlockSpec((Ho, 2 * H), lambda i: (0, 0)),     # [bh | nh]
                pl.BlockSpec((W, 2 * Wo), lambda i: (0, 0)),     # [m*bw^T | (1-m)*nw^T]
            ],
            out_specs=pl.BlockSpec((TB, Ho, Wo), lambda i: (i, 0, 0)),
            scratch_shapes=[pltpu.VMEM((TB, 2 * H, Wo), jnp.float32)],
        ),
        compiler_params=pltpu.CompilerParams(
            dimension_semantics=("parallel",),
            vmem_limit_bytes=int(vmem_limit),
        ),
        cost_estimate=pl.CostEstimate(
            flops=flops, transcendentals=0, bytes_accessed=bytes_accessed),
    )(x_flat, bhnh, bwnw)

    if NC_pad != NC:
        out_flat = out_flat[:NC]
    return out_flat.reshape(N, C, Ho, Wo)


# ---------------------------------------------------------------------------
# Pure-JAX reference (same math, no Pallas) for a sanity check.
# ---------------------------------------------------------------------------
def mixupsample_ref(x, mixing, scale_factor=2):
    N, C, H, W = x.shape
    bh = bilinear_matrix(H, scale_factor)
    bw = bilinear_matrix(W, scale_factor)
    nh = nearest_matrix(H, scale_factor)
    nw = nearest_matrix(W, scale_factor)
    bil = jnp.einsum("oh,nchw,pw->ncop", bh, x, bw)
    nst = jnp.einsum("oh,nchw,pw->ncop", nh, x, nw)
    return mixing * bil + (1.0 - mixing) * nst


if __name__ == "__main__":
    scale = 2

    # Test 1: module-typical small shape (N*C = 8 -> TB = 2, grid = 4).
    N, C, H, W = 2, 4, 16, 16
    x = jax.random.normal(jax.random.PRNGKey(0), (N, C, H, W), dtype=jnp.float32)
    mixing = jnp.array(0.5, dtype=jnp.float32)   # nn.Parameter(torch.tensor(0.5))
    out = jax.block_until_ready(mixupsample(x, mixing, scale_factor=scale))
    ref = jax.block_until_ready(mixupsample_ref(x, mixing, scale))
    assert out.shape == (N, C, H * scale, W * scale)
    assert jnp.allclose(out, ref, atol=1e-5, rtol=1e-5)

    # Test 2: tiny odd N*C and a different mixing value.
    N2, C2, H2, W2 = 1, 3, 8, 8
    x2 = jax.random.normal(jax.random.PRNGKey(1), (N2, C2, H2, W2), dtype=jnp.float32)
    mixing2 = jnp.array(0.3, dtype=jnp.float32)
    out2 = jax.block_until_ready(mixupsample(x2, mixing2, scale_factor=scale))
    ref2 = jax.block_until_ready(mixupsample_ref(x2, mixing2, scale))
    assert out2.shape == (N2, C2, H2 * scale, W2 * scale)
    assert jnp.allclose(out2, ref2, atol=1e-5, rtol=1e-5)

    # Test 3: prime N*C (exercises the pad-to-grid*TB path; no TB=1 fallback).
    N3, C3, H3, W3 = 1, 97, 8, 8
    x3 = jax.random.normal(jax.random.PRNGKey(2), (N3, C3, H3, W3), dtype=jnp.float32)
    mixing3 = jnp.array(0.7, dtype=jnp.float32)
    out3 = jax.block_until_ready(mixupsample(x3, mixing3, scale_factor=scale))
    ref3 = jax.block_until_ready(mixupsample_ref(x3, mixing3, scale))
    assert out3.shape == (N3, C3, H3 * scale, W3 * scale)
    assert jnp.allclose(out3, ref3, atol=1e-5, rtol=1e-5)

    print("KERNEL_OK")
</pallas_src>

<mosaic_0001>
module attributes {stable_mosaic.version = 11 : i64} {
  func.func private @main(%arg0: i32) attributes {dimension_semantics = [#tpu.dimension_semantics<core_parallel>], iteration_bounds = array<i64: 2>, tpu.core_type = #tpu.core_type<sc_scalar_subcore>, window_params = []} {
    return
  }
}

module attributes {stable_mosaic.version = 11 : i64} {
  func.func private @main(%arg0: i32) attributes {dimension_semantics = [#tpu.dimension_semantics<core_parallel>], iteration_bounds = array<i64: 2>, tpu.core_type = #tpu.core_type<sc_scalar_subcore>, window_params = []} {
    return
  }
}

module attributes {stable_mosaic.version = 11 : i64} {
  func.func @mixupsample_kernel(%arg0: i32, %arg1: memref<2x16x16xf32, #tpu.memory_space<vmem>>, %arg2: memref<32x32xf32, #tpu.memory_space<vmem>>, %arg3: memref<16x64xf32, #tpu.memory_space<vmem>>, %arg4: memref<2x32x32xf32, #tpu.memory_space<vmem>>, %arg5: memref<2x32x32xf32, #tpu.memory_space<vmem>>) attributes {dimension_semantics = [#tpu.dimension_semantics<parallel>], iteration_bounds = array<i64: 4>, scalar_prefetch = 0 : i64, scratch_operands = 1 : i64, tpu.core_type = #tpu.core_type<tc>, window_params = [{transform_indices = @transform_0, window_bounds = array<i64: 2, 16, 16>}, {pipeline_mode = #tpu.pipeline_mode<synchronous>, transform_indices = @transform_1, window_bounds = array<i64: 32, 32>}, {pipeline_mode = #tpu.pipeline_mode<synchronous>, transform_indices = @transform_2, window_bounds = array<i64: 16, 64>}, {transform_indices = @transform_3, window_bounds = array<i64: 2, 32, 32>}]} {
    %c0 = arith.constant 0 : index
    %c0_0 = arith.constant 0 : index
    %c0_1 = arith.constant 0 : index
    %0 = vector.load %arg1[%c0, %c0_0, %c0_1] : memref<2x16x16xf32, #tpu.memory_space<vmem>>, vector<2x16x16xf32>
    %1 = vector.shape_cast %0 : vector<2x16x16xf32> to vector<32x16xf32>
    %c0_2 = arith.constant 0 : index
    %c0_3 = arith.constant 0 : index
    %2 = vector.load %arg3[%c0_2, %c0_3] : memref<16x64xf32, #tpu.memory_space<vmem>>, vector<16x64xf32>
    %cst = arith.constant dense<0.000000e+00> : vector<32x64xf32>
    %3 = tpu.matmul %1, %2, %cst {dimension_numbers = #tpu.dot_dimension_numbers<[1], [0], [0], [1], [0, 0, 1, 1], [], []>} : vector<32x16xf32>, vector<16x64xf32>, vector<32x64xf32> -> vector<32x64xf32>
    %4 = vector.shape_cast %3 : vector<32x64xf32> to vector<2x16x64xf32>
    %5 = vector.extract_strided_slice %4 {offsets = [0, 0, 0], sizes = [2, 16, 32], strides = [1, 1, 1]} : vector<2x16x64xf32> to vector<2x16x32xf32>
    %c0_4 = arith.constant 0 : index
    %c0_5 = arith.constant 0 : index
    %c0_6 = arith.constant 0 : index
    %6 = vector.load %arg5[%c0_4, %c0_5, %c0_6] : memref<2x32x32xf32, #tpu.memory_space<vmem>>, vector<2x16x32xf32>
    tpu.vector_store %arg5[%c0_4, %c0_5, %c0_6], %5 {strides = array<i32>} : memref<2x32x32xf32, #tpu.memory_space<vmem>>, vector<2x16x32xf32>,
    %7 = vector.extract_strided_slice %4 {offsets = [0, 0, 32], sizes = [2, 16, 32], strides = [1, 1, 1]} : vector<2x16x64xf32> to vector<2x16x32xf32>
    %c0_7 = arith.constant 0 : index
    %c16 = arith.constant 16 : index
    %c0_8 = arith.constant 0 : index
    %8 = vector.load %arg5[%c0_7, %c16, %c0_8] : memref<2x32x32xf32, #tpu.memory_space<vmem>>, vector<2x16x32xf32>
    tpu.vector_store %arg5[%c0_7, %c16, %c0_8], %7 {strides = array<i32>} : memref<2x32x32xf32, #tpu.memory_space<vmem>>, vector<2x16x32xf32>,
    %c0_9 = arith.constant 0 : index
    %c0_10 = arith.constant 0 : index
    %9 = vector.load %arg2[%c0_9, %c0_10] : memref<32x32xf32, #tpu.memory_space<vmem>>, vector<32x32xf32>
    %c0_11 = arith.constant 0 : index
    %c0_12 = arith.constant 0 : index
    %c0_13 = arith.constant 0 : index
    %10 = vector.load %arg5[%c0_11, %c0_12, %c0_13] : memref<2x32x32xf32, #tpu.memory_space<vmem>>, vector<1x32x32xf32>
    %11 = vector.shape_cast %10 : vector<1x32x32xf32> to vector<32x32xf32>
    %cst_14 = arith.constant dense<0.000000e+00> : vector<32x32xf32>
    %12 = tpu.matmul %9, %11, %cst_14 {dimension_numbers = #tpu.dot_dimension_numbers<[1], [0], [0], [1], [0, 0, 1, 1], [], []>} : vector<32x32xf32>, vector<32x32xf32>, vector<32x32xf32> -> vector<32x32xf32>
    %c0_15 = arith.constant 0 : index
    %c0_16 = arith.constant 0 : index
    %c0_17 = arith.constant 0 : index
    %13 = vector.load %arg4[%c0_15, %c0_16, %c0_17] : memref<2x32x32xf32, #tpu.memory_space<vmem>>, vector<1x32x32xf32>
    %14 = vector.shape_cast %13 : vector<1x32x32xf32> to vector<32x32xf32>
    %15 = vector.shape_cast %12 : vector<32x32xf32> to vector<1x32x32xf32>
    tpu.vector_store %arg4[%c0_15, %c0_16, %c0_17], %15 {strides = array<i32>} : memref<2x32x32xf32, #tpu.memory_space<vmem>>, vector<1x32x32xf32>,
    %c1 = arith.constant 1 : index
    %c0_18 = arith.constant 0 : index
    %c0_19 = arith.constant 0 : index
    %16 = vector.load %arg5[%c1, %c0_18, %c0_19] : memref<2x32x32xf32, #tpu.memory_space<vmem>>, vector<1x32x32xf32>
    %17 = vector.shape_cast %16 : vector<1x32x32xf32> to vector<32x32xf32>
    %cst_20 = arith.constant dense<0.000000e+00> : vector<32x32xf32>
    %18 = tpu.matmul %9, %17, %cst_20 {dimension_numbers = #tpu.dot_dimension_numbers<[1], [0], [0], [1], [0, 0, 1, 1], [], []>} : vector<32x32xf32>, vector<32x32xf32>, vector<32x32xf32> -> vector<32x32xf32>
    %c1_21 = arith.constant 1 : index
    %c0_22 = arith.constant 0 : index
    %c0_23 = arith.constant 0 : index
    %19 = vector.load %arg4[%c1_21, %c0_22, %c0_23] : memref<2x32x32xf32, #tpu.memory_space<vmem>>, vector<1x32x32xf32>
    %20 = vector.shape_cast %19 : vector<1x32x32xf32> to vector<32x32xf32>
    %21 = vector.shape_cast %18 : vector<32x32xf32> to vector<1x32x32xf32>
    tpu.vector_store %arg4[%c1_21, %c0_22, %c0_23], %21 {strides = array<i32>} : memref<2x32x32xf32, #tpu.memory_space<vmem>>, vector<1x32x32xf32>,
    return
  }
  func.func @transform_0(%arg0: i32) -> (i32, i32, i32) {
    %c0_i32 = arith.constant 0 : i32
    %c0_i32_0 = arith.constant 0 : i32
    %c0_i32_1 = arith.constant 0 : i32
    return %arg0, %c0_i32, %c0_i32_0 : i32, i32, i32
  }
  func.func @transform_1(%arg0: i32) -> (i32, i32) {
    %c0_i32 = arith.constant 0 : i32
    %c0_i32_0 = arith.constant 0 : i32
    %c0_i32_1 = arith.constant 0 : i32
    return %c0_i32, %c0_i32_0 : i32, i32
  }
  func.func @transform_2(%arg0: i32) -> (i32, i32) {
    %c0_i32 = arith.constant 0 : i32
    %c0_i32_0 = arith.constant 0 : i32
    %c0_i32_1 = arith.constant 0 : i32
    return %c0_i32, %c0_i32_0 : i32, i32
  }
  func.func @transform_3(%arg0: i32) -> (i32, i32, i32) {
    %c0_i32 = arith.constant 0 : i32
    %c0_i32_0 = arith.constant 0 : i32
    %c0_i32_1 = arith.constant 0 : i32
    return %arg0, %c0_i32, %c0_i32_0 : i32, i32, i32
  }
}

</mosaic_0001>

<llo_original>
// kernel: mixupsample.1
$region0: #{mixupsample.1}
  #allocation0 [shape = 'u32[]', space=smem, size = 0x4, offset = 0x4, fixed_abs, tag = 'smem constant byte address 0x4 - core index']
  #allocation1 [shape = 'u32[144,128]{1,0:T(1,128)}', space=vmem, size = 0x12000, scoped, tag = 'internal scratch']
  #allocation2 [shape = 'f32[2,32,32]{2,1,0:T(8,128)}', space=vmem, size = 0x8000, scoped, tag = 'scratch operand']
  %s0 = inlined_call_operand.vmem [shape: f32[8,16,16], index: 0, kind: input, shape index: {}]
  %s1 = inlined_call_operand.vmem [shape: f32[32,32], index: 1, kind: input, shape index: {}]
  %s2 = inlined_call_operand.vmem [shape: f32[16,64], index: 2, kind: input, shape index: {}]
  %s3 = inlined_call_operand.hbm [shape: f32[8,32,32], index: 3, kind: output, shape index: {}]
  %s4 = sld [smem:[#allocation0]]
  $region45: #{mixupsample.1} parent=0
    _
  %s6 = ssub.s32 1, %s4
  %s7 = scalar_select 0, %s6, %s4
  $region1: #{mixupsample.1} parent=0
    #allocation3 [shape = 'u8[65536]{0}', space=vmem, size = 0x10000, scoped, tag = 'output window, operand 0']
    #allocation4 [shape = 's32[2]{0}', space=sflag, size = 0x8, scoped, tag = 'scoped memory for mixupsample.1']
    %8 = vsyncpa [#allocation4], 0
    %s9 = scalar_lea.sflag [#allocation4], 1
    %10 = vsyncpa %s9, 0
    loop: start=0, step=1, limit=6
    $region2: #{mixupsample.1} parent=1 // loop_pre_header
      _
    $region3: #{mixupsample.1} parent=1 // loop_header
      %s12 = sphi 0, %s16
      %p13 = scmp.ge.s32.totalorder %s12, 6
      %s22 = sphi 0, %s24
      %s25 = sphi 0, %s22
      %s26 = sphi 0, %s25
      %s42 = sphi 0, %s26
      %s46 = sphi 0, %s46
      %s48 = sphi 0, %s46
      %s49 = sphi 0, %s48
      %s63 = sphi 0, %s49
      %s67 = sphi 0, %s67
      %s69 = sphi 0, %s67
      %s70 = sphi 0, %s69
      %s84 = sphi 0, %s70
      %s90 = sphi 0, %s92
      %s93 = sphi 0, %s90
      %s94 = sphi 0, %s93
      %s110 = sphi 0, %s94
    $region4: #{mixupsample.1} parent=1 // loop_header_branch
      %15 = sbr.rel (%p13) target = $region8
    $region5: #{mixupsample.1} parent=1 // loop_body
      %s17 = ssub.s32 %s12, 1
      %s18 = ssub.s32 %s12, 2
      %s19 = sadd.s32 %s12, 1
      %s20 = ssub.s32 %s12, %s19
      %p21 = scmp.eq.s32.totalorder %s20, 0
      %s23 = sadd.s32 %s22, 1
      %s24 = scalar_select %p21, %s22, %s23
      %p27 = pneg %p21
      %p28 = scmp.eq.s32.totalorder %s12, 3
      %p29 = por %p27, %p28
      %p30 = scmp.ne.s32.totalorder %s22, %s25
      %p31 = scmp.eq.s32.totalorder %s12, 0
      %p32 = por %p30, %p31
      %p33 = scmp.ne.s32.totalorder %s22, %s25
      %p34 = scmp.eq.s32.totalorder %s17, 3
      %p35 = por %p33, %p34
      %p36 = scmp.ne.s32.totalorder %s25, %s26
      %p37 = scmp.eq.s32.totalorder %s17, 0
      %p38 = por %p36, %p37
      %p39 = scmp.ne.s32.totalorder %s25, %s26
      %p40 = scmp.eq.s32.totalorder %s18, 3
      %p41 = por %p39, %p40
      %p43 = scmp.ne.s32.totalorder %s26, %s42
      %p44 = scmp.eq.s32.totalorder %s18, 0
      %p45 = por %p43, %p44
      %s47 = sadd.s32 %s46, 1
      %p50 = scmp.eq.s32.totalorder %s12, 3
      %p51 = scmp.ne.s32.totalorder %s46, %s48
      %p52 = scmp.eq.s32.totalorder %s12, 0
      %p53 = por %p51, %p52
      %p54 = scmp.ne.s32.totalorder %s46, %s48
      %p55 = scmp.eq.s32.totalorder %s17, 3
      %p56 = por %p54, %p55
      %p57 = scmp.ne.s32.totalorder %s48, %s49
      %p58 = scmp.eq.s32.totalorder %s17, 0
      %p59 = por %p57, %p58
      %p60 = scmp.ne.s32.totalorder %s48, %s49
      %p61 = scmp.eq.s32.totalorder %s18, 3
      %p62 = por %p60, %p61
      %p64 = scmp.ne.s32.totalorder %s49, %s63
      %p65 = scmp.eq.s32.totalorder %s18, 0
      %p66 = por %p64, %p65
      %s68 = sadd.s32 %s67, 1
      %p71 = scmp.eq.s32.totalorder %s12, 3
      %p72 = scmp.ne.s32.totalorder %s67, %s69
      %p73 = scmp.eq.s32.totalorder %s12, 0
      %p74 = por %p72, %p73
      %p75 = scmp.ne.s32.totalorder %s67, %s69
      %p76 = scmp.eq.s32.totalorder %s17, 3
      %p77 = por %p75, %p76
      %p78 = scmp.ne.s32.totalorder %s69, %s70
      %p79 = scmp.eq.s32.totalorder %s17, 0
      %p80 = por %p78, %p79
      %p81 = scmp.ne.s32.totalorder %s69, %s70
      %p82 = scmp.eq.s32.totalorder %s18, 3
      %p83 = por %p81, %p82
      %p85 = scmp.ne.s32.totalorder %s70, %s84
      %p86 = scmp.eq.s32.totalorder %s18, 0
      %p87 = por %p85, %p86
      %s88 = ssub.s32 %s12, %s19
      %p89 = scmp.eq.s32.totalorder %s88, 0
      %s91 = sadd.s32 %s90, 1
      %s92 = scalar_select %p89, %s90, %s91
      %p95 = pneg %p89
      %p96 = scmp.eq.s32.totalorder %s12, 3
      %p97 = por %p95, %p96
      %p98 = scmp.ne.s32.totalorder %s90, %s93
      %p99 = scmp.eq.s32.totalorder %s12, 0
      %p100 = por %p98, %p99
      %p101 = scmp.ne.s32.totalorder %s90, %s93
      %p102 = scmp.eq.s32.totalorder %s17, 3
      %p103 = por %p101, %p102
      %p104 = scmp.ne.s32.totalorder %s93, %s94
      %p105 = scmp.eq.s32.totalorder %s17, 0
      %p106 = por %p104, %p105
      %p107 = scmp.ne.s32.totalorder %s93, %s94
      %p108 = scmp.eq.s32.totalorder %s18, 3
      %p109 = por %p107, %p108
      %p111 = scmp.ne.s32.totalorder %s94, %s110
      %p112 = scmp.eq.s32.totalorder %s18, 0
      %p113 = por %p111, %p112
      %p114 = scmp.le.s32.totalorder 1, %s12
      %p115 = scmp.lt.s32.totalorder %s12, 5
      %p116 = pnand %p114, %p115
      %p117 = pneg %p116
      // Predicated region
      $region9: #{mixupsample.1} parent=5 // pred_check
        _
      $region10: #{mixupsample.1} parent=5 // pred_check_branch
        %119 = sbr.rel (%p116) target = $region12
      $region11: #{mixupsample.1} parent=5 // pred_region
        %s120 = ssub.s32 %s12, 1
        // Predicated region
        $region13: #{mixupsample.1} parent=11 // pred_check
          %p121 = pneg %p59
        $region14: #{mixupsample.1} parent=11 // pred_check_branch
          %123 = sbr.rel (%p121) target = $region16
        $region15: #{mixupsample.1} parent=11 // pred_region
          _
        $region16: #{mixupsample.1} parent=11 // pred_fallthru
          _
        // Predicated region
        $region17: #{mixupsample.1} parent=11 // pred_check
          %p124 = pneg %p80
        $region18: #{mixupsample.1} parent=11 // pred_check_branch
          %126 = sbr.rel (%p124) target = $region20
        $region19: #{mixupsample.1} parent=11 // pred_region
          _
        $region20: #{mixupsample.1} parent=11 // pred_fallthru
          _
      $region12: #{mixupsample.1} parent=5 // pred_fallthru
        _
      %p127 = scmp.lt.s32.totalorder %s12, 4
      // Predicated region
      $region21: #{mixupsample.1} parent=5 // pred_check
        %p128 = pneg %p127
      $region22: #{mixupsample.1} parent=5 // pred_check_branch
        %130 = sbr.rel (%p128) target = $region24
      $region23: #{mixupsample.1} parent=5 // pred_region
        // Predicated region
        $region25: #{mixupsample.1} parent=23 // pred_check
          %p131 = pneg %p32
        $region26: #{mixupsample.1} parent=23 // pred_check_branch
          %133 = sbr.rel (%p131) target = $region28
        $region27: #{mixupsample.1} parent=23 // pred_region
          %s134 = smul.u32 2, %s12
          %p135 = scmp.lt.s32.totalorder %s134, 7
          %s136 = scalar_select %p135, %s134, 7
          %s137 = smul.addr %s136, 2
          %s138 = smul.addr %s137, 8
          %s139 = scalar_lea.vmem %s0, %s138
          %s140 = smul.u32 2, %s12
        $region28: #{mixupsample.1} parent=23 // pred_fallthru
          _
      $region24: #{mixupsample.1} parent=5 // pred_fallthru
        _
      %p141 = scmp.le.s32.totalorder 1, %s12
      %p142 = scmp.lt.s32.totalorder %s12, 5
      %p143 = pnand %p141, %p142
      %p144 = pneg %p143
      // Predicated region
      $region29: #{mixupsample.1} parent=5 // pred_check
        _
      $region30: #{mixupsample.1} parent=5 // pred_check_branch
        %146 = sbr.rel (%p143) target = $region32
      $region31: #{mixupsample.1} parent=5 // pred_region
        %s147 = ssub.s32 %s12, 1
        %s148 = smul.u32 2, %s17
        %p149 = scmp.lt.s32.totalorder %s148, 7
        %s150 = scalar_select %p149, %s148, 7
        %s151 = smul.addr %s150, 2
        %s152 = smul.addr %s151, 8
        %s153 = scalar_lea.vmem %s0, %s152
        %p154 = pneg %p38
        %p155 = pneg %p35
        %p156 = pneg %p59
        %p157 = pneg %p56
        %p158 = pneg %p80
        %p159 = pneg %p77
        %p160 = pneg %p106
        %p161 = pneg %p103
        %s162 = sand.u32 %s93, 1
        %s163 = scalar_lea.sflag [#allocation4], %s162
        %s164 = sand.u32 %s93, 1
        %s165 = smul.addr %s164, 64
        %s166 = scalar_lea.vmem [#allocation3], %s165
        %s167 = smul.u32 2, %s17
        %p168 = scmp.lt.s32.totalorder %s167, 7
        %s169 = scalar_select %p168, %s167, 7
        %s170 = smul.addr %s169, 2
        %s171 = smul.addr %s170, 8
        %s172 = scalar_lea.vmem %s0, %s171
        %s173 = smul.u32 2, %s17
        %s174 = smul.u32 2, %s17
        %v175 = vld [vmem:[%s172] sm:$0xff]
        %v176 = vld [vmem:[%s172 + $0x8] sm:$0xff]
        %v177 = vld [vmem:[%s172 + $0x10] sm:$0xff]
        %v178 = vld [vmem:[%s172 + $0x18] sm:$0xff]
        %v179 = vld [vmem:[%s2] sm:$0xff]
        %v180 = vld [vmem:[%s2 + $0x8] sm:$0xff]
        %vm181 = vcmask 130048
        %v183 = vsel %vm181, %v175, 0
        %v186 = vsel %vm181, %v176, 0
        %v189 = vsel %vm181, %v177, 0
        %v192 = vsel %vm181, %v178, 0
        %194 = vmatprep.subr.mxu0 0.0
        %195 = vmatpush1.msra.mxu0 %v179
        %196 = vmatprep.subr.mxu0 0.0
        %197 = vmatpush1.msra.mxu0 %v180
        %198 = vmatprep.subr.mxu0 0.0
        %199 = vmatpush1.msra.mxu0 0.0
        %200 = vmatprep.subr.mxu0 0.0
        %201 = vmatpush1.msra.mxu0 0.0
        %202 = vmatprep.subr.mxu0 0.0
        %203 = vmatpush1.msra.mxu0 0.0
        %204 = vmatprep.subr.mxu0 0.0
        %205 = vmatpush1.msra.mxu0 0.0
        %206 = vmatprep.subr.mxu0 0.0
        %207 = vmatpush1.msra.mxu0 0.0
        %208 = vmatprep.subr.mxu0 0.0
        %209 = vmatpush1.msra.mxu0 0.0
        %210 = vmatprep.subr.mxu0 0.0
        %211 = vmatpush1.msra.mxu0 0.0
        %212 = vmatprep.subr.mxu0 0.0
        %213 = vmatpush1.msra.mxu0 0.0
        %214 = vmatprep.subr.mxu0 0.0
        %215 = vmatpush1.msra.mxu0 0.0
        %216 = vmatprep.subr.mxu0 0.0
        %217 = vmatpush1.msra.mxu0 0.0
        %218 = vmatprep.subr.mxu0 0.0
        %219 = vmatpush1.msra.mxu0 0.0
        %220 = vmatprep.subr.mxu0 0.0
        %221 = vmatpush1.msra.mxu0 0.0
        %222 = vmatprep.subr.mxu0 0.0
        %223 = vmatpush1.msra.mxu0 0.0
        %224 = vmatprep.subr.mxu0 0.0
        %225 = vmatpush1.msra.mxu0 0.0
        %226 = vmatprep.subr.mxu0 0.0
        %227 = vmatpush1.msra.mxu0 0.0
        %228 = vmatprep.subr.mxu0 0.0
        %229 = vmatpush1.msra.mxu0 0.0
        %230 = vmatprep.subr.mxu0 0.0
        %231 = vmatpush1.msra.mxu0 0.0
        %232 = vmatprep.subr.mxu0 0.0
        %233 = vmatpush1.msra.mxu0 0.0
        %234 = vmatprep.subr.mxu0 0.0
        %235 = vmatpush1.msra.mxu0 0.0
        %236 = vmatprep.subr.mxu0 0.0
        %237 = vmatpush1.msra.mxu0 0.0
        %238 = vmatprep.subr.mxu0 0.0
        %239 = vmatpush1.msra.mxu0 0.0
        %240 = vmatprep.subr.mxu0 0.0
        %241 = vmatpush1.msra.mxu0 0.0
        %242 = vmatprep.subr.mxu0 0.0
        %243 = vmatpush1.msra.mxu0 0.0
        %244 = vmatprep.subr.mxu0 0.0
        %245 = vmatpush1.msra.mxu0 0.0
        %246 = vmatprep.subr.mxu0 0.0
        %247 = vmatpush1.msra.mxu0 0.0
        %248 = vmatprep.subr.mxu0 0.0
        %249 = vmatpush1.msra.mxu0 0.0
        %250 = vmatprep.subr.mxu0 0.0
        %251 = vmatpush1.msra.mxu0 0.0
        %252 = vmatprep.subr.mxu0 0.0
        %253 = vmatpush1.msra.mxu0 0.0
        %254 = vmatprep.subr.mxu0 0.0
        %255 = vmatpush1.msra.mxu0 0.0
        %256 = vmatprep.subr.mxu0 0.0
        %257 = vmatpush1.msra.mxu0 0.0
        %258 = vmatprep.mubr.f32.mxu0 0.0
        %259 = vmatmul.mubr.f32.gmra.mrb[0].mxu0 %v183
        %v260 = vpop.f32.mrb[0].mxu0
        %v261 = vadd.f32 0.0, %v260
        %v262 = vpop.f32.mrb[0].mxu0
        %263 = vmatprep.mubr.f32.mxu0 0.0
        %264 = vmatmul.mubr.f32.gmra.mrb[0].mxu0 %v186
        %v265 = vpop.f32.mrb[0].mxu0
        %v266 = vadd.f32 0.0, %v265
        %v267 = vpop.f32.mrb[0].mxu0
        %268 = vmatprep.mubr.f32.mxu0 0.0
        %269 = vmatmul.mubr.f32.gmra.mrb[0].mxu0 %v189
        %v270 = vpop.f32.mrb[0].mxu0
        %v271 = vadd.f32 0.0, %v270
        %v272 = vpop.f32.mrb[0].mxu0
        %273 = vmatprep.mubr.f32.mxu0 0.0
        %274 = vmatmul.mubr.f32.gmra.mrb[0].mxu0 %v192
        %v275 = vpop.f32.mrb[0].mxu0
        %v276 = vadd.f32 0.0, %v275
        %v277 = vpop.f32.mrb[0].mxu0
        %278 = vdwg.mxu0
        %vm279 = vcmask 261120
        %280 = vst.msk [vmem:[#allocation2] sm:$0xff] %vm279, %v261
        %281 = vst.msk [vmem:[#allocation2 + $0x8] sm:$0xff] %vm279, %v266
        %282 = vst.msk [vmem:[#allocation2 + $0x20] sm:$0xff] %vm279, %v271
        %283 = vst.msk [vmem:[#allocation2 + $0x28] sm:$0xff] %vm279, %v276
        %288 = vrot.lane.b32.xlu0 %v261, 96
        %v289 = vpop.permute.xlu0 %288
        %290 = vrot.lane.b32.xlu0 %v266, 96
        %v291 = vpop.permute.xlu0 %290
        %292 = vrot.lane.b32.xlu0 %v271, 96
        %v293 = vpop.permute.xlu0 %292
        %294 = vrot.lane.b32.xlu0 %v276, 96
        %v295 = vpop.permute.xlu0 %294
        %300 = vst.msk [vmem:[#allocation2 + $0x10] sm:$0xff] %vm279, %v289
        %301 = vst.msk [vmem:[#allocation2 + $0x18] sm:$0xff] %vm279, %v291
        %302 = vst.msk [vmem:[#allocation2 + $0x30] sm:$0xff] %vm279, %v293
        %303 = vst.msk [vmem:[#allocation2 + $0x38] sm:$0xff] %vm279, %v295
        %v304 = vld [vmem:[%s1] sm:$0xff]
        %v305 = vld [vmem:[%s1 + $0x8] sm:$0xff]
        %v306 = vld [vmem:[%s1 + $0x10] sm:$0xff]
        %v307 = vld [vmem:[%s1 + $0x18] sm:$0xff]
        %v308 = vld [vmem:[#allocation2] sm:$0xff]
        %v309 = vld [vmem:[#allocation2 + $0x8] sm:$0xff]
        %v310 = vld [vmem:[#allocation2 + $0x10] sm:$0xff]
        %v311 = vld [vmem:[#allocation2 + $0x18] sm:$0xff]
        %v313 = vsel %vm279, %v304, 0
        %v316 = vsel %vm279, %v305, 0
        %v319 = vsel %vm279, %v306, 0
        %v322 = vsel %vm279, %v307, 0
        %324 = vmatprep.subr.mxu0 0.0
        %325 = vmatpush1.msra.mxu0 %v308
        %326 = vmatprep.subr.mxu0 0.0
        %327 = vmatpush1.msra.mxu0 %v309
        %328 = vmatprep.subr.mxu0 0.0
        %329 = vmatpush1.msra.mxu0 %v310
        %330 = vmatprep.subr.mxu0 0.0
        %331 = vmatpush1.msra.mxu0 %v311
        %332 = vmatprep.subr.mxu0 0.0
        %333 = vmatpush1.msra.mxu0 0.0
        %334 = vmatprep.subr.mxu0 0.0
        %335 = vmatpush1.msra.mxu0 0.0
        %336 = vmatprep.subr.mxu0 0.0
        %337 = vmatpush1.msra.mxu0 0.0
        %338 = vmatprep.subr.mxu0 0.0
        %339 = vmatpush1.msra.mxu0 0.0
        %340 = vmatprep.subr.mxu0 0.0
        %341 = vmatpush1.msra.mxu0 0.0
        %342 = vmatprep.subr.mxu0 0.0
        %343 = vmatpush1.msra.mxu0 0.0
        %344 = vmatprep.subr.mxu0 0.0
        %345 = vmatpush1.msra.mxu0 0.0
        %346 = vmatprep.subr.mxu0 0.0
        %347 = vmatpush1.msra.mxu0 0.0
        %348 = vmatprep.subr.mxu0 0.0
        %349 = vmatpush1.msra.mxu0 0.0
        %350 = vmatprep.subr.mxu0 0.0
        %351 = vmatpush1.msra.mxu0 0.0
        %352 = vmatprep.subr.mxu0 0.0
        %353 = vmatpush1.msra.mxu0 0.0
        %354 = vmatprep.subr.mxu0 0.0
        %355 = vmatpush1.msra.mxu0 0.0
        %356 = vmatprep.subr.mxu0 0.0
        %357 = vmatpush1.msra.mxu0 0.0
        %358 = vmatprep.subr.mxu0 0.0
        %359 = vmatpush1.msra.mxu0 0.0
        %360 = vmatprep.subr.mxu0 0.0
        %361 = vmatpush1.msra.mxu0 0.0
        %362 = vmatprep.subr.mxu0 0.0
        %363 = vmatpush1.msra.mxu0 0.0
        %364 = vmatprep.subr.mxu0 0.0
        %365 = vmatpush1.msra.mxu0 0.0
        %366 = vmatprep.subr.mxu0 0.0
        %367 = vmatpush1.msra.mxu0 0.0
        %368 = vmatprep.subr.mxu0 0.0
        %369 = vmatpush1.msra.mxu0 0.0
        %370 = vmatprep.subr.mxu0 0.0
        %371 = vmatpush1.msra.mxu0 0.0
        %372 = vmatprep.subr.mxu0 0.0
        %373 = vmatpush1.msra.mxu0 0.0
        %374 = vmatprep.subr.mxu0 0.0
        %375 = vmatpush1.msra.mxu0 0.0
        %376 = vmatprep.subr.mxu0 0.0
        %377 = vmatpush1.msra.mxu0 0.0
        %378 = vmatprep.subr.mxu0 0.0
        %379 = vmatpush1.msra.mxu0 0.0
        %380 = vmatprep.subr.mxu0 0.0
        %381 = vmatpush1.msra.mxu0 0.0
        %382 = vmatprep.subr.mxu0 0.0
        %383 = vmatpush1.msra.mxu0 0.0
        %384 = vmatprep.subr.mxu0 0.0
        %385 = vmatpush1.msra.mxu0 0.0
        %386 = vmatprep.subr.mxu0 0.0
        %387 = vmatpush1.msra.mxu0 0.0
        %388 = vmatprep.mubr.f32.mxu0 0.0
        %389 = vmatmul.mubr.f32.gmra.mrb[0].mxu0 %v313
        %v390 = vpop.f32.mrb[0].mxu0
        %v391 = vadd.f32 0.0, %v390
        %v392 = vpop.f32.mrb[0].mxu0
        %393 = vmatprep.mubr.f32.mxu0 0.0
        %394 = vmatmul.mubr.f32.gmra.mrb[0].mxu0 %v316
        %v395 = vpop.f32.mrb[0].mxu0
        %v396 = vadd.f32 0.0, %v395
        %v397 = vpop.f32.mrb[0].mxu0
        %398 = vmatprep.mubr.f32.mxu0 0.0
        %399 = vmatmul.mubr.f32.gmra.mrb[0].mxu0 %v319
        %v400 = vpop.f32.mrb[0].mxu0
        %v401 = vadd.f32 0.0, %v400
        %v402 = vpop.f32.mrb[0].mxu0
        %403 = vmatprep.mubr.f32.mxu0 0.0
        %404 = vmatmul.mubr.f32.gmra.mrb[0].mxu0 %v322
        %v405 = vpop.f32.mrb[0].mxu0
        %v406 = vadd.f32 0.0, %v405
        %v407 = vpop.f32.mrb[0].mxu0
        %408 = vdwg.mxu0
        %409 = vst.msk [vmem:[%s166] sm:$0xff] %vm279, %v391
        %410 = vst.msk [vmem:[%s166 + $0x8] sm:$0xff] %vm279, %v396
        %411 = vst.msk [vmem:[%s166 + $0x10] sm:$0xff] %vm279, %v401
        %412 = vst.msk [vmem:[%s166 + $0x18] sm:$0xff] %vm279, %v406
        %s413 = scalar_lea.vmem [#allocation2], 32
        %v414 = vld [vmem:[%s413] sm:$0xff]
        %v415 = vld [vmem:[%s413 + $0x8] sm:$0xff]
        %v416 = vld [vmem:[%s413 + $0x10] sm:$0xff]
        %v417 = vld [vmem:[%s413 + $0x18] sm:$0xff]
        %418 = vmatprep.subr.mxu0 0.0
        %419 = vmatpush1.msra.mxu0 %v414
        %420 = vmatprep.subr.mxu0 0.0
        %421 = vmatpush1.msra.mxu0 %v415
        %422 = vmatprep.subr.mxu0 0.0
        %423 = vmatpush1.msra.mxu0 %v416
        %424 = vmatprep.subr.mxu0 0.0
        %425 = vmatpush1.msra.mxu0 %v417
        %426 = vmatprep.subr.mxu0 0.0
        %427 = vmatpush1.msra.mxu0 0.0
        %428 = vmatprep.subr.mxu0 0.0
        %429 = vmatpush1.msra.mxu0 0.0
        %430 = vmatprep.subr.mxu0 0.0
        %431 = vmatpush1.msra.mxu0 0.0
        %432 = vmatprep.subr.mxu0 0.0
        %433 = vmatpush1.msra.mxu0 0.0
        %434 = vmatprep.subr.mxu0 0.0
        %435 = vmatpush1.msra.mxu0 0.0
        %436 = vmatprep.subr.mxu0 0.0
        %437 = vmatpush1.msra.mxu0 0.0
        %438 = vmatprep.subr.mxu0 0.0
        %439 = vmatpush1.msra.mxu0 0.0
        %440 = vmatprep.subr.mxu0 0.0
        %441 = vmatpush1.msra.mxu0 0.0
        %442 = vmatprep.subr.mxu0 0.0
        %443 = vmatpush1.msra.mxu0 0.0
        %444 = vmatprep.subr.mxu0 0.0
        %445 = vmatpush1.msra.mxu0 0.0
        %446 = vmatprep.subr.mxu0 0.0
        %447 = vmatpush1.msra.mxu0 0.0
        %448 = vmatprep.subr.mxu0 0.0
        %449 = vmatpush1.msra.mxu0 0.0
        %450 = vmatprep.subr.mxu0 0.0
        %451 = vmatpush1.msra.mxu0 0.0
        %452 = vmatprep.subr.mxu0 0.0
        %453 = vmatpush1.msra.mxu0 0.0
        %454 = vmatprep.subr.mxu0 0.0
        %455 = vmatpush1.msra.mxu0 0.0
        %456 = vmatprep.subr.mxu0 0.0
        %457 = vmatpush1.msra.mxu0 0.0
        %458 = vmatprep.subr.mxu0 0.0
        %459 = vmatpush1.msra.mxu0 0.0
        %460 = vmatprep.subr.mxu0 0.0
        %461 = vmatpush1.msra.mxu0 0.0
        %462 = vmatprep.subr.mxu0 0.0
        %463 = vmatpush1.msra.mxu0 0.0
        %464 = vmatprep.subr.mxu0 0.0
        %465 = vmatpush1.msra.mxu0 0.0
        %466 = vmatprep.subr.mxu0 0.0
        %467 = vmatpush1.msra.mxu0 0.0
        %468 = vmatprep.subr.mxu0 0.0
        %469 = vmatpush1.msra.mxu0 0.0
        %470 = vmatprep.subr.mxu0 0.0
        %471 = vmatpush1.msra.mxu0 0.0
        %472 = vmatprep.subr.mxu0 0.0
        %473 = vmatpush1.msra.mxu0 0.0
        %474 = vmatprep.subr.mxu0 0.0
        %475 = vmatpush1.msra.mxu0 0.0
        %476 = vmatprep.subr.mxu0 0.0
        %477 = vmatpush1.msra.mxu0 0.0
        %478 = vmatprep.subr.mxu0 0.0
        %479 = vmatpush1.msra.mxu0 0.0
        %480 = vmatprep.subr.mxu0 0.0
        %481 = vmatpush1.msra.mxu0 0.0
        %482 = vmatprep.mubr.f32.mxu0 0.0
        %483 = vmatmul.mubr.f32.gmra.mrb[0].mxu0 %v313
        %v484 = vpop.f32.mrb[0].mxu0
        %v485 = vadd.f32 0.0, %v484
        %v486 = vpop.f32.mrb[0].mxu0
        %487 = vmatprep.mubr.f32.mxu0 0.0
        %488 = vmatmul.mubr.f32.gmra.mrb[0].mxu0 %v316
        %v489 = vpop.f32.mrb[0].mxu0
        %v490 = vadd.f32 0.0, %v489
        %v491 = vpop.f32.mrb[0].mxu0
        %492 = vmatprep.mubr.f32.mxu0 0.0
        %493 = vmatmul.mubr.f32.gmra.mrb[0].mxu0 %v319
        %v494 = vpop.f32.mrb[0].mxu0
        %v495 = vadd.f32 0.0, %v494
        %v496 = vpop.f32.mrb[0].mxu0
        %497 = vmatprep.mubr.f32.mxu0 0.0
        %498 = vmatmul.mubr.f32.gmra.mrb[0].mxu0 %v322
        %v499 = vpop.f32.mrb[0].mxu0
        %v500 = vadd.f32 0.0, %v499
        %v501 = vpop.f32.mrb[0].mxu0
        %502 = vdwg.mxu0
        %s503 = scalar_lea.vmem %s166, 32 [#allocation3]
        %504 = vst.msk [vmem:[%s503] sm:$0xff] %vm279, %v485
        %505 = vst.msk [vmem:[%s503 + $0x8] sm:$0xff] %vm279, %v490
        %506 = vst.msk [vmem:[%s503 + $0x10] sm:$0xff] %vm279, %v495
        %507 = vst.msk [vmem:[%s503 + $0x18] sm:$0xff] %vm279, %v500
        %s508 = sand.u32 %s93, 1
        %s509 = scalar_lea.sflag [#allocation4], %s508
        %s510 = sand.u32 %s93, 1
        %s511 = smul.addr %s510, 64
        %s512 = scalar_lea.vmem [#allocation3], %s511
        // Predicated region
        $region33: #{mixupsample.1} parent=31 // pred_check
          %p513 = pneg %p103
        $region34: #{mixupsample.1} parent=31 // pred_check_branch
          %515 = sbr.rel (%p513) target = $region36
        $region35: #{mixupsample.1} parent=31 // pred_region
          %s516 = smul.u32 2, %s17
          %s518 = ssub.s32 1024, 1024
          %519 = vsyncadd %s509, %s518
          %s520 = smul.addr %s516, 4
          %s521 = smul.addr %s520, 128
          %s522 = scalar_lea.hbm %s3, %s521
          %s523 = sshll.u32 %s512, 4
          %s524 = int_to_ptr.vmem [resolvable:$true] %s523
          %529 = dma.vmem_to_hbm [thread:$0]  %s524, 1024, %s522, %s509, 128, 128, 8
        $region36: #{mixupsample.1} parent=31 // pred_fallthru
          _
      $region32: #{mixupsample.1} parent=5 // pred_fallthru
        _
      %p530 = scmp.le.s32.totalorder 2, %s12
      // Predicated region
      $region37: #{mixupsample.1} parent=5 // pred_check
        %p531 = pneg %p530
      $region38: #{mixupsample.1} parent=5 // pred_check_branch
        %533 = sbr.rel (%p531) target = $region40
      $region39: #{mixupsample.1} parent=5 // pred_region
        %s534 = ssub.s32 %s12, 2
        // Predicated region
        $region41: #{mixupsample.1} parent=39 // pred_check
          %p535 = pneg %p109
        $region42: #{mixupsample.1} parent=39 // pred_check_branch
          %537 = sbr.rel (%p535) target = $region44
        $region43: #{mixupsample.1} parent=39 // pred_region
          %s538 = sand.u32 %s94, 1
          %s539 = scalar_lea.sflag [#allocation4], %s538
          %s540 = sand.u32 %s94, 1
          %s541 = smul.addr %s540, 64
          %s542 = scalar_lea.vmem [#allocation3], %s541
          %543 = dma.done %s539, 1024
        $region44: #{mixupsample.1} parent=39 // pred_fallthru
          _
      $region40: #{mixupsample.1} parent=5 // pred_fallthru
        _
    $region6: #{mixupsample.1} parent=1 // loop_footer
      %s16 = sadd.s32 1, %s12
    $region7: #{mixupsample.1} parent=1 // loop_footer_branch
      %11 = sbr.rel target = $region3
    $region8: #{mixupsample.1} parent=1 // loop_exit
      _
    %544 = vsyncpa [#allocation4], 1
    %s545 = scalar_lea.sflag [#allocation4], 1
    %546 = vsyncpa %s545, 1

</llo_original>
